<compile_context>
chip_gen: v5e
topology: v5e:2x2
jax: 0.10.0
libtpu: 0.0.40
codegen_flags: <defaults>
</compile_context>

<pallas_src>
import math

import jax
import jax.numpy as jnp
from jax import lax
from jax.experimental import pallas as pl
from jax.experimental.pallas import tpu as pltpu


def _ds_conv_kernel(p00_ref, p01_ref, p10_ref, p11_ref, h00_ref, h01_ref,
                    w_ref, b_ref, o_ref):
    # pRC_ref : [1, TH, W_out(+1 if C-parity 0), C] bf16   phase[ry][rx][i,j,c] = x_pad[2i+ry, 2j+rx, c]
    # hC_ref  : [1, 1,  W_out(+1 if C-parity 0), C] bf16   halo row (t+1)*TH of the row-parity-0 phases
    # w_ref   : [9*C, N_PAD] bf16   row index = (ky*3+kx)*C + ci
    # b_ref   : [1, N_PAD]   f32
    # o_ref   : [1, TH*W_out, N_PAD] f32
    _, R, _ = o_ref.shape
    TH = p00_ref.shape[1]
    C = p00_ref.shape[3]
    W_out = p01_ref.shape[2]

    bodies = ((p00_ref, p01_ref), (p10_ref, p11_ref))   # [row parity][col parity]
    halos = (h00_ref, h01_ref)                           # only row-parity 0 needs the +1 row

    cols = []
    for ky in range(3):
        ry, dy = ky % 2, ky // 2
        for kx in range(3):
            rx, dx = kx % 2, kx // 2
            body = bodies[ry][rx]
            if dy == 0:
                a = body[0, :, dx:dx + W_out, :]                         # (TH, W_out, C)
            else:
                halo = halos[rx][0, :, dx:dx + W_out, :]                 # (1, W_out, C)
                if TH > 1:
                    a = jnp.concatenate(
                        [body[0, 1:TH, dx:dx + W_out, :], halo], axis=0)
                else:
                    a = halo
            cols.append(a.reshape(TH * W_out, C))

    patch = jnp.concatenate(cols, axis=-1)                               # (R, 9*C) bf16
    acc = jnp.dot(patch, w_ref[...], preferred_element_type=jnp.float32)  # single MXU pass
    o_ref[0] = acc + b_ref[...]                                          # bias folded into the store


def downsample_forward(x_nchw, weight_oihw, bias, t=None):
    """Pallas implementation of Downsample.forward: Conv2d(C, C, 3, stride=2, pad=1)."""
    del t  # unused, kept to match the PyTorch signature
    B, C, H, W = x_nchw.shape
    H_out = (H + 1) // 2
    W_out = (W + 1) // 2
    W0 = W_out + 1                                 # width of col-parity-0 phases (covers kx=2)
    N_PAD = max(128, -(-C // 128) * 128)           # lane-dense output channels

    # ---- per-generation tile planning --------------------------------------
    try:
        vmem_cap = int(pltpu.get_tpu_info().vmem_capacity_bytes)
    except Exception:
        vmem_cap = 64 << 20                        # conservative (v7x-like) fallback
    big_vmem = vmem_cap >= (100 << 20)             # v5e/v6e: 128 MiB ; v7x: 64 MiB
    vmem_clamp = (96 << 20) if big_vmem else (32 << 20)
    target_rows = 1024 if big_vmem else 512

    g8 = 8 // math.gcd(W_out, 8)                   # TH multiple of g8 => TH*W_out % 8 == 0

    def plan(target):
        th = max(1, min(H_out, target // max(W_out, 1)))
        if th < H_out:
            th = -(-th // g8) * g8
        nt = -(-H_out // th)
        if nt == 1:
            th = H_out
        return th, nt

    def vmem_estimate(th):
        in_blk = 2 * th * (W0 + W_out) * C * 2            # 4 phase blocks, bf16
        halo_blk = (W0 + W_out) * C * 2
        out_blk = th * W_out * N_PAD * 4
        w_bytes = 9 * C * N_PAD * 2 + N_PAD * 4
        im2col = th * W_out * 9 * C * 2
        scratch = (5 * im2col) // 2 + th * W_out * N_PAD * 4
        return 2 * (in_blk + halo_blk + out_blk) + 2 * w_bytes + scratch + (2 << 20)

    TH, n_tiles = plan(target_rows)
    while vmem_estimate(TH) > vmem_clamp and target_rows > 128 and TH > 1:
        target_rows //= 2
        TH, n_tiles = plan(target_rows)

    # make sure a batch-1 call still exposes >=2 grid steps (both v7x TensorCores busy)
    if B * n_tiles < 2 and H_out >= 2:
        th2 = -(-((H_out + 1) // 2) // g8) * g8
        if 0 < th2 < H_out:
            TH = th2
            n_tiles = -(-H_out // TH)
    H_out_pad = n_tiles * TH

    # ---- glue (XLA, ~1 read + 1 write of the activation) -------------------
    # phase[ry][rx][i, j, c] = x[2i+ry-1, 2j+rx-1, c]  (zero outside the image)
    def build_phase(row_par, col_par, n_rows, n_cols):
        pad_t = 1 if row_par == 0 else 0
        pad_l = 1 if col_par == 0 else 0
        body = x_nchw[:, :, pad_t::2, pad_l::2]
        body = body[:, :, :n_rows - pad_t, :n_cols - pad_l]
        body = jnp.transpose(body, (0, 2, 3, 1)).astype(jnp.bfloat16)   # NHWC bf16
        return jnp.pad(body, ((0, 0),
                              (pad_t, n_rows - pad_t - body.shape[1]),
                              (pad_l, n_cols - pad_l - body.shape[2]),
                              (0, 0)))

    p00 = build_phase(0, 0, H_out_pad, W0)
    p01 = build_phase(0, 1, H_out_pad, W_out)
    p10 = build_phase(1, 0, H_out_pad, W0)
    p11 = build_phase(1, 1, H_out_pad, W_out)

    # halo[b, t] = row (t+1)*TH of the row-parity-0 phase = x row 2*(t+1)*TH - 1 (or zeros)
    def build_halo(col_par):
        pad_l = 1 if col_par == 0 else 0
        n_cols = W0 if col_par == 0 else W_out
        rows = x_nchw[:, :, 2 * TH - 1::2 * TH, pad_l::2]
        rows = rows[:, :, :n_tiles, :n_cols - pad_l]
        rows = jnp.transpose(rows, (0, 2, 3, 1)).astype(jnp.bfloat16)
        return jnp.pad(rows, ((0, 0),
                              (0, n_tiles - rows.shape[1]),
                              (pad_l, n_cols - pad_l - rows.shape[2]),
                              (0, 0)))

    h00 = build_halo(0)
    h01 = build_halo(1)

    # weight OIHW -> (kh, kw, Ci, Co) -> (9*Ci, Co), pad Co to N_PAD, bf16
    w2d = jnp.transpose(weight_oihw, (2, 3, 1, 0)).reshape(9 * C, C)
    w2d = jnp.pad(w2d, ((0, 0), (0, N_PAD - C))).astype(jnp.bfloat16)
    b_row = jnp.pad(bias, (0, N_PAD - C)).reshape(1, N_PAD).astype(jnp.float32)

    # ---- Pallas call --------------------------------------------------------
    R = TH * W_out
    grid = (B, n_tiles)
    phase_idx = lambda i, j: (i, j, 0, 0)
    in_specs = [
        pl.BlockSpec((1, TH, W0, C), phase_idx),       # p00
        pl.BlockSpec((1, TH, W_out, C), phase_idx),    # p01
        pl.BlockSpec((1, TH, W0, C), phase_idx),       # p10
        pl.BlockSpec((1, TH, W_out, C), phase_idx),    # p11
        pl.BlockSpec((1, 1, W0, C), phase_idx),        # h00
        pl.BlockSpec((1, 1, W_out, C), phase_idx),     # h01
        pl.BlockSpec((9 * C, N_PAD), lambda i, j: (0, 0)),   # weights: constant -> fetched once
        pl.BlockSpec((1, N_PAD), lambda i, j: (0, 0)),        # bias: constant -> fetched once
    ]
    out_spec = pl.BlockSpec((1, R, N_PAD), lambda i, j: (i, j, 0))

    vmem_limit = int(min(max(vmem_estimate(TH), 16 << 20), vmem_clamp))

    in_bytes = (p00.size + p01.size + p10.size + p11.size + h00.size + h01.size) * 2
    cost = pl.CostEstimate(
        flops=2 * B * H_out_pad * W_out * 9 * C * N_PAD,
        transcendentals=0,
        bytes_accessed=int(in_bytes + w2d.size * 2 + N_PAD * 4
                           + B * H_out_pad * W_out * N_PAD * 4),
    )

    out = pl.pallas_call(
        _ds_conv_kernel,
        out_shape=jax.ShapeDtypeStruct((B, n_tiles * R, N_PAD), jnp.float32),
        grid_spec=pltpu.PrefetchScalarGridSpec(
            num_scalar_prefetch=0,
            grid=grid,
            in_specs=in_specs,
            out_specs=out_spec,
        ),
        compiler_params=pltpu.CompilerParams(
            dimension_semantics=("parallel", "parallel"),
            vmem_limit_bytes=vmem_limit,
        ),
        cost_estimate=cost,
    )(p00, p01, p10, p11, h00, h01, w2d, b_row)

    out = out.reshape(B, H_out_pad, W_out, N_PAD)[:, :H_out, :, :C]
    return jnp.transpose(out, (0, 3, 1, 2))       # back to NCHW, float32


if __name__ == "__main__":
    key = jax.random.PRNGKey(0)
    B, C, H, W = 2, 4, 16, 16
    T_CH = 32  # time-embedding channels (t is unused by Downsample, signature parity)

    k_x, k_w, k_b, k_t = jax.random.split(key, 4)
    x = jax.random.normal(k_x, (B, C, H, W), dtype=jnp.float32)
    t_emb = jax.random.normal(k_t, (B, T_CH), dtype=jnp.float32)

    # deterministic Conv2d(C, C, 3, 3) parameters (PyTorch OIHW weight + bias)
    fan_in = C * 3 * 3
    bound = 1.0 / math.sqrt(fan_in)
    weight = jax.random.uniform(k_w, (C, C, 3, 3), minval=-bound, maxval=bound,
                                dtype=jnp.float32)
    bias = jax.random.uniform(k_b, (C,), minval=-bound, maxval=bound,
                              dtype=jnp.float32)

    fwd = jax.jit(downsample_forward)
    out = jax.block_until_ready(fwd(x, weight, bias, t_emb))
    assert out.shape == (B, C, H // 2, W // 2)

    # reference 1: exact f32 conv (module semantics); kernel uses bf16 MXU inputs,
    # so compare with a bf16-appropriate tolerance.
    ref_f32 = lax.conv_general_dilated(
        x, weight, window_strides=(2, 2), padding=((1, 1), (1, 1)),
        dimension_numbers=("NCHW", "OIHW", "NCHW"),
        precision=lax.Precision.HIGHEST) + bias.reshape(1, C, 1, 1)
    assert jnp.allclose(out, ref_f32, atol=5e-2, rtol=5e-2), \
        float(jnp.max(jnp.abs(out - ref_f32)))

    # reference 2: f32 conv on bf16-rounded inputs — isolates accumulation-order error.
    xb = x.astype(jnp.bfloat16).astype(jnp.float32)
    wb = weight.astype(jnp.bfloat16).astype(jnp.float32)
    ref_bf16 = lax.conv_general_dilated(
        xb, wb, window_strides=(2, 2), padding=((1, 1), (1, 1)),
        dimension_numbers=("NCHW", "OIHW", "NCHW"),
        precision=lax.Precision.HIGHEST) + bias.reshape(1, C, 1, 1)
    assert jnp.allclose(out, ref_bf16, atol=2e-3, rtol=2e-3), \
        float(jnp.max(jnp.abs(out - ref_bf16)))

    print("KERNEL_OK")
</pallas_src>

<mosaic_0001>
module attributes {stable_mosaic.version = 11 : i64} {
  func.func @_ds_conv_kernel(%arg0: i32, %arg1: i32, %arg2: memref<1x8x9x4xbf16, #tpu.memory_space<vmem>>, %arg3: memref<1x8x8x4xbf16, #tpu.memory_space<vmem>>, %arg4: memref<1x8x9x4xbf16, #tpu.memory_space<vmem>>, %arg5: memref<1x8x8x4xbf16, #tpu.memory_space<vmem>>, %arg6: memref<1x1x9x4xbf16, #tpu.memory_space<vmem>>, %arg7: memref<1x1x8x4xbf16, #tpu.memory_space<vmem>>, %arg8: memref<36x128xbf16, #tpu.memory_space<vmem>>, %arg9: memref<1x128xf32, #tpu.memory_space<vmem>>, %arg10: memref<1x64x128xf32, #tpu.memory_space<vmem>>) attributes {dimension_semantics = [#tpu.dimension_semantics<parallel>, #tpu.dimension_semantics<parallel>], iteration_bounds = array<i64: 2, 1>, scalar_prefetch = 0 : i64, scratch_operands = 0 : i64, tpu.core_type = #tpu.core_type<tc>, window_params = [{transform_indices = @transform_0, window_bounds = array<i64: 1, 8, 9, 4>}, {transform_indices = @transform_1, window_bounds = array<i64: 1, 8, 8, 4>}, {transform_indices = @transform_2, window_bounds = array<i64: 1, 8, 9, 4>}, {transform_indices = @transform_3, window_bounds = array<i64: 1, 8, 8, 4>}, {transform_indices = @transform_4, window_bounds = array<i64: 1, 1, 9, 4>}, {transform_indices = @transform_5, window_bounds = array<i64: 1, 1, 8, 4>}, {pipeline_mode = #tpu.pipeline_mode<synchronous>, transform_indices = @transform_6, window_bounds = array<i64: 36, 128>}, {pipeline_mode = #tpu.pipeline_mode<synchronous>, transform_indices = @transform_7, window_bounds = array<i64: 1, 128>}, {transform_indices = @transform_8, window_bounds = array<i64: 1, 64, 128>}]} {
    %c0 = arith.constant 0 : index
    %c0_0 = arith.constant 0 : index
    %c0_1 = arith.constant 0 : index
    %c0_2 = arith.constant 0 : index
    %0 = vector.load %arg2[%c0, %c0_0, %c0_1, %c0_2] : memref<1x8x9x4xbf16, #tpu.memory_space<vmem>>, vector<1x8x8x4xbf16>
    %1 = vector.shape_cast %0 : vector<1x8x8x4xbf16> to vector<8x8x4xbf16>
    %2 = vector.shape_cast %1 : vector<8x8x4xbf16> to vector<64x4xbf16>
    %c0_3 = arith.constant 0 : index
    %c0_4 = arith.constant 0 : index
    %c0_5 = arith.constant 0 : index
    %c0_6 = arith.constant 0 : index
    %3 = vector.load %arg3[%c0_3, %c0_4, %c0_5, %c0_6] : memref<1x8x8x4xbf16, #tpu.memory_space<vmem>>, vector<1x8x8x4xbf16>
    %4 = vector.shape_cast %3 : vector<1x8x8x4xbf16> to vector<8x8x4xbf16>
    %5 = vector.shape_cast %4 : vector<8x8x4xbf16> to vector<64x4xbf16>
    %c0_7 = arith.constant 0 : index
    %c0_8 = arith.constant 0 : index
    %c1 = arith.constant 1 : index
    %c0_9 = arith.constant 0 : index
    %6 = vector.load %arg2[%c0_7, %c0_8, %c1, %c0_9] : memref<1x8x9x4xbf16, #tpu.memory_space<vmem>>, vector<1x8x8x4xbf16>
    %7 = vector.shape_cast %6 : vector<1x8x8x4xbf16> to vector<8x8x4xbf16>
    %8 = vector.shape_cast %7 : vector<8x8x4xbf16> to vector<64x4xbf16>
    %c0_10 = arith.constant 0 : index
    %c0_11 = arith.constant 0 : index
    %c0_12 = arith.constant 0 : index
    %c0_13 = arith.constant 0 : index
    %9 = vector.load %arg4[%c0_10, %c0_11, %c0_12, %c0_13] : memref<1x8x9x4xbf16, #tpu.memory_space<vmem>>, vector<1x8x8x4xbf16>
    %10 = vector.shape_cast %9 : vector<1x8x8x4xbf16> to vector<8x8x4xbf16>
    %11 = vector.shape_cast %10 : vector<8x8x4xbf16> to vector<64x4xbf16>
    %c0_14 = arith.constant 0 : index
    %c0_15 = arith.constant 0 : index
    %c0_16 = arith.constant 0 : index
    %c0_17 = arith.constant 0 : index
    %12 = vector.load %arg5[%c0_14, %c0_15, %c0_16, %c0_17] : memref<1x8x8x4xbf16, #tpu.memory_space<vmem>>, vector<1x8x8x4xbf16>
    %13 = vector.shape_cast %12 : vector<1x8x8x4xbf16> to vector<8x8x4xbf16>
    %14 = vector.shape_cast %13 : vector<8x8x4xbf16> to vector<64x4xbf16>
    %c0_18 = arith.constant 0 : index
    %c0_19 = arith.constant 0 : index
    %c1_20 = arith.constant 1 : index
    %c0_21 = arith.constant 0 : index
    %15 = vector.load %arg4[%c0_18, %c0_19, %c1_20, %c0_21] : memref<1x8x9x4xbf16, #tpu.memory_space<vmem>>, vector<1x8x8x4xbf16>
    %16 = vector.shape_cast %15 : vector<1x8x8x4xbf16> to vector<8x8x4xbf16>
    %17 = vector.shape_cast %16 : vector<8x8x4xbf16> to vector<64x4xbf16>
    %c0_22 = arith.constant 0 : index
    %c0_23 = arith.constant 0 : index
    %c0_24 = arith.constant 0 : index
    %c0_25 = arith.constant 0 : index
    %18 = vector.load %arg6[%c0_22, %c0_23, %c0_24, %c0_25] : memref<1x1x9x4xbf16, #tpu.memory_space<vmem>>, vector<1x1x8x4xbf16>
    %19 = vector.shape_cast %18 : vector<1x1x8x4xbf16> to vector<1x8x4xbf16>
    %c0_26 = arith.constant 0 : index
    %c1_27 = arith.constant 1 : index
    %c0_28 = arith.constant 0 : index
    %c0_29 = arith.constant 0 : index
    %20 = vector.load %arg2[%c0_26, %c1_27, %c0_28, %c0_29] : memref<1x8x9x4xbf16, #tpu.memory_space<vmem>>, vector<1x7x8x4xbf16>
    %21 = vector.shape_cast %20 : vector<1x7x8x4xbf16> to vector<7x8x4xbf16>
    %22 = tpu.concatenate %21, %19 in 0 : vector<7x8x4xbf16>, vector<1x8x4xbf16> -> vector<8x8x4xbf16>
    %23 = vector.shape_cast %22 : vector<8x8x4xbf16> to vector<64x4xbf16>
    %c0_30 = arith.constant 0 : index
    %c0_31 = arith.constant 0 : index
    %c0_32 = arith.constant 0 : index
    %c0_33 = arith.constant 0 : index
    %24 = vector.load %arg7[%c0_30, %c0_31, %c0_32, %c0_33] : memref<1x1x8x4xbf16, #tpu.memory_space<vmem>>, vector<1x1x8x4xbf16>
    %25 = vector.shape_cast %24 : vector<1x1x8x4xbf16> to vector<1x8x4xbf16>
    %c0_34 = arith.constant 0 : index
    %c1_35 = arith.constant 1 : index
    %c0_36 = arith.constant 0 : index
    %c0_37 = arith.constant 0 : index
    %26 = vector.load %arg3[%c0_34, %c1_35, %c0_36, %c0_37] : memref<1x8x8x4xbf16, #tpu.memory_space<vmem>>, vector<1x7x8x4xbf16>
    %27 = vector.shape_cast %26 : vector<1x7x8x4xbf16> to vector<7x8x4xbf16>
    %28 = tpu.concatenate %27, %25 in 0 : vector<7x8x4xbf16>, vector<1x8x4xbf16> -> vector<8x8x4xbf16>
    %29 = vector.shape_cast %28 : vector<8x8x4xbf16> to vector<64x4xbf16>
    %c0_38 = arith.constant 0 : index
    %c0_39 = arith.constant 0 : index
    %c1_40 = arith.constant 1 : index
    %c0_41 = arith.constant 0 : index
    %30 = vector.load %arg6[%c0_38, %c0_39, %c1_40, %c0_41] : memref<1x1x9x4xbf16, #tpu.memory_space<vmem>>, vector<1x1x8x4xbf16>
    %31 = vector.shape_cast %30 : vector<1x1x8x4xbf16> to vector<1x8x4xbf16>
    %c0_42 = arith.constant 0 : index
    %c1_43 = arith.constant 1 : index
    %c1_44 = arith.constant 1 : index
    %c0_45 = arith.constant 0 : index
    %32 = vector.load %arg2[%c0_42, %c1_43, %c1_44, %c0_45] : memref<1x8x9x4xbf16, #tpu.memory_space<vmem>>, vector<1x7x8x4xbf16>
    %33 = vector.shape_cast %32 : vector<1x7x8x4xbf16> to vector<7x8x4xbf16>
    %34 = tpu.concatenate %33, %31 in 0 : vector<7x8x4xbf16>, vector<1x8x4xbf16> -> vector<8x8x4xbf16>
    %35 = vector.shape_cast %34 : vector<8x8x4xbf16> to vector<64x4xbf16>
    %36 = tpu.concatenate %2, %5, %8, %11, %14, %17, %23, %29, %35 in 1 : vector<64x4xbf16>, vector<64x4xbf16>, vector<64x4xbf16>, vector<64x4xbf16>, vector<64x4xbf16>, vector<64x4xbf16>, vector<64x4xbf16>, vector<64x4xbf16>, vector<64x4xbf16> -> vector<64x36xbf16>
    %c0_46 = arith.constant 0 : index
    %c0_47 = arith.constant 0 : index
    %37 = vector.load %arg8[%c0_46, %c0_47] : memref<36x128xbf16, #tpu.memory_space<vmem>>, vector<36x128xbf16>
    %cst = arith.constant dense<0.000000e+00> : vector<64x128xf32>
    %38 = tpu.matmul %36, %37, %cst {dimension_numbers = #tpu.dot_dimension_numbers<[1], [0], [0], [1], [0, 0, 1, 1], [], []>} : vector<64x36xbf16>, vector<36x128xbf16>, vector<64x128xf32> -> vector<64x128xf32>
    %c0_48 = arith.constant 0 : index
    %c0_49 = arith.constant 0 : index
    %39 = vector.load %arg9[%c0_48, %c0_49] : memref<1x128xf32, #tpu.memory_space<vmem>>, vector<1x128xf32>
    %40 = vector.broadcast %39 : vector<1x128xf32> to vector<64x128xf32>
    %41 = arith.addf %38, %40 : vector<64x128xf32>
    %c0_50 = arith.constant 0 : index
    %c0_51 = arith.constant 0 : index
    %c0_52 = arith.constant 0 : index
    %42 = vector.load %arg10[%c0_50, %c0_51, %c0_52] : memref<1x64x128xf32, #tpu.memory_space<vmem>>, vector<1x64x128xf32>
    %43 = vector.shape_cast %42 : vector<1x64x128xf32> to vector<64x128xf32>
    %44 = vector.shape_cast %41 : vector<64x128xf32> to vector<1x64x128xf32>
    tpu.vector_store %arg10[%c0_50, %c0_51, %c0_52], %44 {strides = array<i32>} : memref<1x64x128xf32, #tpu.memory_space<vmem>>, vector<1x64x128xf32>,
    return
  }
  func.func @transform_0(%arg0: i32, %arg1: i32) -> (i32, i32, i32, i32) {
    %c0_i32 = arith.constant 0 : i32
    %c0_i32_0 = arith.constant 0 : i32
    %c0_i32_1 = arith.constant 0 : i32
    return %arg0, %arg1, %c0_i32, %c0_i32_0 : i32, i32, i32, i32
  }
  func.func @transform_1(%arg0: i32, %arg1: i32) -> (i32, i32, i32, i32) {
    %c0_i32 = arith.constant 0 : i32
    %c0_i32_0 = arith.constant 0 : i32
    %c0_i32_1 = arith.constant 0 : i32
    return %arg0, %arg1, %c0_i32, %c0_i32_0 : i32, i32, i32, i32
  }
  func.func @transform_2(%arg0: i32, %arg1: i32) -> (i32, i32, i32, i32) {
    %c0_i32 = arith.constant 0 : i32
    %c0_i32_0 = arith.constant 0 : i32
    %c0_i32_1 = arith.constant 0 : i32
    return %arg0, %arg1, %c0_i32, %c0_i32_0 : i32, i32, i32, i32
  }
  func.func @transform_3(%arg0: i32, %arg1: i32) -> (i32, i32, i32, i32) {
    %c0_i32 = arith.constant 0 : i32
    %c0_i32_0 = arith.constant 0 : i32
    %c0_i32_1 = arith.constant 0 : i32
    return %arg0, %arg1, %c0_i32, %c0_i32_0 : i32, i32, i32, i32
  }
  func.func @transform_4(%arg0: i32, %arg1: i32) -> (i32, i32, i32, i32) {
    %c0_i32 = arith.constant 0 : i32
    %c0_i32_0 = arith.constant 0 : i32
    %c0_i32_1 = arith.constant 0 : i32
    return %arg0, %arg1, %c0_i32, %c0_i32_0 : i32, i32, i32, i32
  }
  func.func @transform_5(%arg0: i32, %arg1: i32) -> (i32, i32, i32, i32) {
    %c0_i32 = arith.constant 0 : i32
    %c0_i32_0 = arith.constant 0 : i32
    %c0_i32_1 = arith.constant 0 : i32
    return %arg0, %arg1, %c0_i32, %c0_i32_0 : i32, i32, i32, i32
  }
  func.func @transform_6(%arg0: i32, %arg1: i32) -> (i32, i32) {
    %c0_i32 = arith.constant 0 : i32
    %c0_i32_0 = arith.constant 0 : i32
    %c0_i32_1 = arith.constant 0 : i32
    return %c0_i32, %c0_i32_0 : i32, i32
  }
  func.func @transform_7(%arg0: i32, %arg1: i32) -> (i32, i32) {
    %c0_i32 = arith.constant 0 : i32
    %c0_i32_0 = arith.constant 0 : i32
    %c0_i32_1 = arith.constant 0 : i32
    return %c0_i32, %c0_i32_0 : i32, i32
  }
  func.func @transform_8(%arg0: i32, %arg1: i32) -> (i32, i32, i32) {
    %c0_i32 = arith.constant 0 : i32
    %c0_i32_0 = arith.constant 0 : i32
    return %arg0, %arg1, %c0_i32 : i32, i32, i32
  }
}

</mosaic_0001>

<llo_original>
// kernel: downsample_forward.1
$region0: #{downsample_forward.1}
  #allocation0 [shape = 'u32[]', space=smem, size = 0x4, offset = 0x4, fixed_abs, tag = 'smem constant byte address 0x4 - core index']
  #allocation1 [shape = 'u32[72,128]{1,0:T(1,128)}', space=vmem, size = 0x9000, scoped, tag = 'internal scratch']
  %s0 = inlined_call_operand.vmem [shape: bf16[2,8,9,4], index: 0, kind: input, shape index: {}]
  %s1 = inlined_call_operand.vmem [shape: bf16[2,8,8,4], index: 1, kind: input, shape index: {}]
  %s2 = inlined_call_operand.vmem [shape: bf16[2,8,9,4], index: 2, kind: input, shape index: {}]
  %s3 = inlined_call_operand.vmem [shape: bf16[2,8,8,4], index: 3, kind: input, shape index: {}]
  %s4 = inlined_call_operand.vmem [shape: bf16[2,1,9,4], index: 4, kind: input, shape index: {}]
  %s5 = inlined_call_operand.vmem [shape: bf16[2,1,8,4], index: 5, kind: input, shape index: {}]
  %s6 = inlined_call_operand.vmem [shape: bf16[36,128], index: 6, kind: input, shape index: {}]
  %s7 = inlined_call_operand.vmem [shape: f32[1,128], index: 7, kind: input, shape index: {}]
  %s8 = inlined_call_operand.vmem [shape: f32[2,64,128], index: 8, kind: output, shape index: {}]
  %s9 = sld [smem:[#allocation0]]
  $region65: #{downsample_forward.1} parent=0
    _
  %s11 = ssub.s32 1, %s9
  %s12 = scalar_select 0, %s11, %s9
  loop: start=0, step=1, limit=4
  $region2: #{downsample_forward.1} parent=0 // loop_pre_header
    _
  $region3: #{downsample_forward.1} parent=0 // loop_header
    %s14 = sphi 0, %s18
    %p15 = scmp.ge.s32.totalorder %s14, 4
    %s21 = sphi 0, %s33
    %s22 = sphi 0, %s29
    %s23 = sphi 0, %s21
    %s24 = sphi 0, %s22
    %s25 = sphi 0, %s23
    %s26 = sphi 0, %s24
    %s38 = sphi 0, %s40
    %s41 = sphi 0, %s38
    %s42 = sphi 0, %s41
    %s58 = sphi 0, %s42
    %s66 = sphi 0, %s68
    %s69 = sphi 0, %s66
    %s70 = sphi 0, %s69
    %s86 = sphi 0, %s70
    %s94 = sphi 0, %s96
    %s97 = sphi 0, %s94
    %s98 = sphi 0, %s97
    %s114 = sphi 0, %s98
    %s122 = sphi 0, %s124
    %s125 = sphi 0, %s122
    %s126 = sphi 0, %s125
    %s142 = sphi 0, %s126
    %s150 = sphi 0, %s152
    %s153 = sphi 0, %s150
    %s154 = sphi 0, %s153
    %s170 = sphi 0, %s154
    %s178 = sphi 0, %s180
    %s181 = sphi 0, %s178
    %s182 = sphi 0, %s181
    %s198 = sphi 0, %s182
    %s202 = sphi 0, %s202
    %s204 = sphi 0, %s202
    %s205 = sphi 0, %s204
    %s219 = sphi 0, %s205
    %s223 = sphi 0, %s223
    %s225 = sphi 0, %s223
    %s226 = sphi 0, %s225
    %s240 = sphi 0, %s226
    %s248 = sphi 0, %s250
    %s251 = sphi 0, %s248
    %s252 = sphi 0, %s251
    %s268 = sphi 0, %s252
  $region4: #{downsample_forward.1} parent=0 // loop_header_branch
    %17 = sbr.rel (%p15) target = $region8
  $region5: #{downsample_forward.1} parent=0 // loop_body
    %s19 = ssub.s32 %s14, 1
    %s20 = ssub.s32 %s14, 2
    %s27 = sadd.s32 1, %s22
    %p28 = scmp.ge.s32.totalorder %s27, 1
    %s29 = scalar_select %p28, 0, %s27
    %s30 = sadd.s32 1, %s21
    %s31 = scalar_select %p28, %s30, %s21
    %p32 = scmp.ge.s32.totalorder %s31, 2
    %s33 = scalar_select %p32, 0, %s31
    %s34 = ssub.s32 %s21, %s33
    %s35 = ssub.s32 %s22, %s29
    %s36 = sor.u32 %s34, %s35
    %p37 = scmp.eq.s32.totalorder %s36, 0
    %s39 = sadd.s32 %s38, 1
    %s40 = scalar_select %p37, %s38, %s39
    %p43 = pneg %p37
    %p44 = scmp.eq.s32.totalorder %s14, 1
    %p45 = por %p43, %p44
    %p46 = scmp.ne.s32.totalorder %s38, %s41
    %p47 = scmp.eq.s32.totalorder %s14, 0
    %p48 = por %p46, %p47
    %p49 = scmp.ne.s32.totalorder %s38, %s41
    %p50 = scmp.eq.s32.totalorder %s19, 1
    %p51 = por %p49, %p50
    %p52 = scmp.ne.s32.totalorder %s41, %s42
    %p53 = scmp.eq.s32.totalorder %s19, 0
    %p54 = por %p52, %p53
    %p55 = scmp.ne.s32.totalorder %s41, %s42
    %p56 = scmp.eq.s32.totalorder %s20, 1
    %p57 = por %p55, %p56
    %p59 = scmp.ne.s32.totalorder %s42, %s58
    %p60 = scmp.eq.s32.totalorder %s20, 0
    %p61 = por %p59, %p60
    %s62 = ssub.s32 %s21, %s33
    %s63 = ssub.s32 %s22, %s29
    %s64 = sor.u32 %s62, %s63
    %p65 = scmp.eq.s32.totalorder %s64, 0
    %s67 = sadd.s32 %s66, 1
    %s68 = scalar_select %p65, %s66, %s67
    %p71 = pneg %p65
    %p72 = scmp.eq.s32.totalorder %s14, 1
    %p73 = por %p71, %p72
    %p74 = scmp.ne.s32.totalorder %s66, %s69
    %p75 = scmp.eq.s32.totalorder %s14, 0
    %p76 = por %p74, %p75
    %p77 = scmp.ne.s32.totalorder %s66, %s69
    %p78 = scmp.eq.s32.totalorder %s19, 1
    %p79 = por %p77, %p78
    %p80 = scmp.ne.s32.totalorder %s69, %s70
    %p81 = scmp.eq.s32.totalorder %s19, 0
    %p82 = por %p80, %p81
    %p83 = scmp.ne.s32.totalorder %s69, %s70
    %p84 = scmp.eq.s32.totalorder %s20, 1
    %p85 = por %p83, %p84
    %p87 = scmp.ne.s32.totalorder %s70, %s86
    %p88 = scmp.eq.s32.totalorder %s20, 0
    %p89 = por %p87, %p88
    %s90 = ssub.s32 %s21, %s33
    %s91 = ssub.s32 %s22, %s29
    %s92 = sor.u32 %s90, %s91
    %p93 = scmp.eq.s32.totalorder %s92, 0
    %s95 = sadd.s32 %s94, 1
    %s96 = scalar_select %p93, %s94, %s95
    %p99 = pneg %p93
    %p100 = scmp.eq.s32.totalorder %s14, 1
    %p101 = por %p99, %p100
    %p102 = scmp.ne.s32.totalorder %s94, %s97
    %p103 = scmp.eq.s32.totalorder %s14, 0
    %p104 = por %p102, %p103
    %p105 = scmp.ne.s32.totalorder %s94, %s97
    %p106 = scmp.eq.s32.totalorder %s19, 1
    %p107 = por %p105, %p106
    %p108 = scmp.ne.s32.totalorder %s97, %s98
    %p109 = scmp.eq.s32.totalorder %s19, 0
    %p110 = por %p108, %p109
    %p111 = scmp.ne.s32.totalorder %s97, %s98
    %p112 = scmp.eq.s32.totalorder %s20, 1
    %p113 = por %p111, %p112
    %p115 = scmp.ne.s32.totalorder %s98, %s114
    %p116 = scmp.eq.s32.totalorder %s20, 0
    %p117 = por %p115, %p116
    %s118 = ssub.s32 %s21, %s33
    %s119 = ssub.s32 %s22, %s29
    %s120 = sor.u32 %s118, %s119
    %p121 = scmp.eq.s32.totalorder %s120, 0
    %s123 = sadd.s32 %s122, 1
    %s124 = scalar_select %p121, %s122, %s123
    %p127 = pneg %p121
    %p128 = scmp.eq.s32.totalorder %s14, 1
    %p129 = por %p127, %p128
    %p130 = scmp.ne.s32.totalorder %s122, %s125
    %p131 = scmp.eq.s32.totalorder %s14, 0
    %p132 = por %p130, %p131
    %p133 = scmp.ne.s32.totalorder %s122, %s125
    %p134 = scmp.eq.s32.totalorder %s19, 1
    %p135 = por %p133, %p134
    %p136 = scmp.ne.s32.totalorder %s125, %s126
    %p137 = scmp.eq.s32.totalorder %s19, 0
    %p138 = por %p136, %p137
    %p139 = scmp.ne.s32.totalorder %s125, %s126
    %p140 = scmp.eq.s32.totalorder %s20, 1
    %p141 = por %p139, %p140
    %p143 = scmp.ne.s32.totalorder %s126, %s142
    %p144 = scmp.eq.s32.totalorder %s20, 0
    %p145 = por %p143, %p144
    %s146 = ssub.s32 %s21, %s33
    %s147 = ssub.s32 %s22, %s29
    %s148 = sor.u32 %s146, %s147
    %p149 = scmp.eq.s32.totalorder %s148, 0
    %s151 = sadd.s32 %s150, 1
    %s152 = scalar_select %p149, %s150, %s151
    %p155 = pneg %p149
    %p156 = scmp.eq.s32.totalorder %s14, 1
    %p157 = por %p155, %p156
    %p158 = scmp.ne.s32.totalorder %s150, %s153
    %p159 = scmp.eq.s32.totalorder %s14, 0
    %p160 = por %p158, %p159
    %p161 = scmp.ne.s32.totalorder %s150, %s153
    %p162 = scmp.eq.s32.totalorder %s19, 1
    %p163 = por %p161, %p162
    %p164 = scmp.ne.s32.totalorder %s153, %s154
    %p165 = scmp.eq.s32.totalorder %s19, 0
    %p166 = por %p164, %p165
    %p167 = scmp.ne.s32.totalorder %s153, %s154
    %p168 = scmp.eq.s32.totalorder %s20, 1
    %p169 = por %p167, %p168
    %p171 = scmp.ne.s32.totalorder %s154, %s170
    %p172 = scmp.eq.s32.totalorder %s20, 0
    %p173 = por %p171, %p172
    %s174 = ssub.s32 %s21, %s33
    %s175 = ssub.s32 %s22, %s29
    %s176 = sor.u32 %s174, %s175
    %p177 = scmp.eq.s32.totalorder %s176, 0
    %s179 = sadd.s32 %s178, 1
    %s180 = scalar_select %p177, %s178, %s179
    %p183 = pneg %p177
    %p184 = scmp.eq.s32.totalorder %s14, 1
    %p185 = por %p183, %p184
    %p186 = scmp.ne.s32.totalorder %s178, %s181
    %p187 = scmp.eq.s32.totalorder %s14, 0
    %p188 = por %p186, %p187
    %p189 = scmp.ne.s32.totalorder %s178, %s181
    %p190 = scmp.eq.s32.totalorder %s19, 1
    %p191 = por %p189, %p190
    %p192 = scmp.ne.s32.totalorder %s181, %s182
    %p193 = scmp.eq.s32.totalorder %s19, 0
    %p194 = por %p192, %p193
    %p195 = scmp.ne.s32.totalorder %s181, %s182
    %p196 = scmp.eq.s32.totalorder %s20, 1
    %p197 = por %p195, %p196
    %p199 = scmp.ne.s32.totalorder %s182, %s198
    %p200 = scmp.eq.s32.totalorder %s20, 0
    %p201 = por %p199, %p200
    %s203 = sadd.s32 %s202, 1
    %p206 = scmp.eq.s32.totalorder %s14, 1
    %p207 = scmp.ne.s32.totalorder %s202, %s204
    %p208 = scmp.eq.s32.totalorder %s14, 0
    %p209 = por %p207, %p208
    %p210 = scmp.ne.s32.totalorder %s202, %s204
    %p211 = scmp.eq.s32.totalorder %s19, 1
    %p212 = por %p210, %p211
    %p213 = scmp.ne.s32.totalorder %s204, %s205
    %p214 = scmp.eq.s32.totalorder %s19, 0
    %p215 = por %p213, %p214
    %p216 = scmp.ne.s32.totalorder %s204, %s205
    %p217 = scmp.eq.s32.totalorder %s20, 1
    %p218 = por %p216, %p217
    %p220 = scmp.ne.s32.totalorder %s205, %s219
    %p221 = scmp.eq.s32.totalorder %s20, 0
    %p222 = por %p220, %p221
    %s224 = sadd.s32 %s223, 1
    %p227 = scmp.eq.s32.totalorder %s14, 1
    %p228 = scmp.ne.s32.totalorder %s223, %s225
    %p229 = scmp.eq.s32.totalorder %s14, 0
    %p230 = por %p228, %p229
    %p231 = scmp.ne.s32.totalorder %s223, %s225
    %p232 = scmp.eq.s32.totalorder %s19, 1
    %p233 = por %p231, %p232
    %p234 = scmp.ne.s32.totalorder %s225, %s226
    %p235 = scmp.eq.s32.totalorder %s19, 0
    %p236 = por %p234, %p235
    %p237 = scmp.ne.s32.totalorder %s225, %s226
    %p238 = scmp.eq.s32.totalorder %s20, 1
    %p239 = por %p237, %p238
    %p241 = scmp.ne.s32.totalorder %s226, %s240
    %p242 = scmp.eq.s32.totalorder %s20, 0
    %p243 = por %p241, %p242
    %s244 = ssub.s32 %s21, %s33
    %s245 = ssub.s32 %s22, %s29
    %s246 = sor.u32 %s244, %s245
    %p247 = scmp.eq.s32.totalorder %s246, 0
    %s249 = sadd.s32 %s248, 1
    %s250 = scalar_select %p247, %s248, %s249
    %p253 = pneg %p247
    %p254 = scmp.eq.s32.totalorder %s14, 1
    %p255 = por %p253, %p254
    %p256 = scmp.ne.s32.totalorder %s248, %s251
    %p257 = scmp.eq.s32.totalorder %s14, 0
    %p258 = por %p256, %p257
    %p259 = scmp.ne.s32.totalorder %s248, %s251
    %p260 = scmp.eq.s32.totalorder %s19, 1
    %p261 = por %p259, %p260
    %p262 = scmp.ne.s32.totalorder %s251, %s252
    %p263 = scmp.eq.s32.totalorder %s19, 0
    %p264 = por %p262, %p263
    %p265 = scmp.ne.s32.totalorder %s251, %s252
    %p266 = scmp.eq.s32.totalorder %s20, 1
    %p267 = por %p265, %p266
    %p269 = scmp.ne.s32.totalorder %s252, %s268
    %p270 = scmp.eq.s32.totalorder %s20, 0
    %p271 = por %p269, %p270
    %p272 = scmp.le.s32.totalorder 1, %s14
    %p273 = scmp.lt.s32.totalorder %s14, 3
    %p274 = pnand %p272, %p273
    %p275 = pneg %p274
    // Predicated region
    $region9: #{downsample_forward.1} parent=5 // pred_check
      _
    $region10: #{downsample_forward.1} parent=5 // pred_check_branch
      %277 = sbr.rel (%p274) target = $region12
    $region11: #{downsample_forward.1} parent=5 // pred_region
      %s278 = ssub.s32 %s14, 1
      // Predicated region
      $region13: #{downsample_forward.1} parent=11 // pred_check
        %p279 = pneg %p215
      $region14: #{downsample_forward.1} parent=11 // pred_check_branch
        %281 = sbr.rel (%p279) target = $region16
      $region15: #{downsample_forward.1} parent=11 // pred_region
        _
      $region16: #{downsample_forward.1} parent=11 // pred_fallthru
        _
      // Predicated region
      $region17: #{downsample_forward.1} parent=11 // pred_check
        %p282 = pneg %p236
      $region18: #{downsample_forward.1} parent=11 // pred_check_branch
        %284 = sbr.rel (%p282) target = $region20
      $region19: #{downsample_forward.1} parent=11 // pred_region
        _
      $region20: #{downsample_forward.1} parent=11 // pred_fallthru
        _
    $region12: #{downsample_forward.1} parent=5 // pred_fallthru
      _
    %p285 = scmp.lt.s32.totalorder %s14, 2
    // Predicated region
    $region21: #{downsample_forward.1} parent=5 // pred_check
      %p286 = pneg %p285
    $region22: #{downsample_forward.1} parent=5 // pred_check_branch
      %288 = sbr.rel (%p286) target = $region24
    $region23: #{downsample_forward.1} parent=5 // pred_region
      // Predicated region
      $region25: #{downsample_forward.1} parent=23 // pred_check
        %p289 = pneg %p48
      $region26: #{downsample_forward.1} parent=23 // pred_check_branch
        %291 = sbr.rel (%p289) target = $region28
      $region27: #{downsample_forward.1} parent=23 // pred_region
        %s292 = smul.u32 8, %s22
        %p293 = scmp.lt.s32.totalorder %s21, 1
        %s294 = scalar_select %p293, %s21, 1
        %p295 = scmp.lt.s32.totalorder %s292, 7
        %s296 = scalar_select %p295, %s292, 7
        %s297 = smul.addr %s296, 2
        %s298 = smul.addr %s294, 16
        %s299 = sadd.s32 %s297, %s298
        %s300 = smul.addr %s299, 4
        %s301 = scalar_lea.vmem %s0, %s300
        %s302 = smul.u32 8, %s22
      $region28: #{downsample_forward.1} parent=23 // pred_fallthru
        _
      // Predicated region
      $region29: #{downsample_forward.1} parent=23 // pred_check
        %p303 = pneg %p76
      $region30: #{downsample_forward.1} parent=23 // pred_check_branch
        %305 = sbr.rel (%p303) target = $region32
      $region31: #{downsample_forward.1} parent=23 // pred_region
        %s306 = smul.u32 8, %s22
        %p307 = scmp.lt.s32.totalorder %s21, 1
        %s308 = scalar_select %p307, %s21, 1
        %p309 = scmp.lt.s32.totalorder %s306, 7
        %s310 = scalar_select %p309, %s306, 7
        %s311 = smul.addr %s308, 8
        %s312 = sadd.s32 %s310, %s311
        %s313 = smul.addr %s312, 4
        %s314 = scalar_lea.vmem %s1, %s313
        %s315 = smul.u32 8, %s22
      $region32: #{downsample_forward.1} parent=23 // pred_fallthru
        _
      // Predicated region
      $region33: #{downsample_forward.1} parent=23 // pred_check
        %p316 = pneg %p104
      $region34: #{downsample_forward.1} parent=23 // pred_check_branch
        %318 = sbr.rel (%p316) target = $region36
      $region35: #{downsample_forward.1} parent=23 // pred_region
        %s319 = smul.u32 8, %s22
        %p320 = scmp.lt.s32.totalorder %s21, 1
        %s321 = scalar_select %p320, %s21, 1
        %p322 = scmp.lt.s32.totalorder %s319, 7
        %s323 = scalar_select %p322, %s319, 7
        %s324 = smul.addr %s323, 2
        %s325 = smul.addr %s321, 16
        %s326 = sadd.s32 %s324, %s325
        %s327 = smul.addr %s326, 4
        %s328 = scalar_lea.vmem %s2, %s327
        %s329 = smul.u32 8, %s22
      $region36: #{downsample_forward.1} parent=23 // pred_fallthru
        _
      // Predicated region
      $region37: #{downsample_forward.1} parent=23 // pred_check
        %p330 = pneg %p132
      $region38: #{downsample_forward.1} parent=23 // pred_check_branch
        %332 = sbr.rel (%p330) target = $region40
      $region39: #{downsample_forward.1} parent=23 // pred_region
        %s333 = smul.u32 8, %s22
        %p334 = scmp.lt.s32.totalorder %s21, 1
        %s335 = scalar_select %p334, %s21, 1
        %p336 = scmp.lt.s32.totalorder %s333, 7
        %s337 = scalar_select %p336, %s333, 7
        %s338 = smul.addr %s335, 8
        %s339 = sadd.s32 %s337, %s338
        %s340 = smul.addr %s339, 4
        %s341 = scalar_lea.vmem %s3, %s340
        %s342 = smul.u32 8, %s22
      $region40: #{downsample_forward.1} parent=23 // pred_fallthru
        _
      // Predicated region
      $region41: #{downsample_forward.1} parent=23 // pred_check
        %p343 = pneg %p160
      $region42: #{downsample_forward.1} parent=23 // pred_check_branch
        %345 = sbr.rel (%p343) target = $region44
      $region43: #{downsample_forward.1} parent=23 // pred_region
        %p346 = scmp.lt.s32.totalorder %s21, 1
        %s347 = scalar_select %p346, %s21, 1
        %p348 = scmp.lt.s32.totalorder %s22, 0
        %s349 = scalar_select %p348, %s22, 0
        %s350 = smul.addr %s349, 2
        %s351 = smul.addr %s347, 2
        %s352 = sadd.s32 %s350, %s351
        %s353 = smul.addr %s352, 4
        %s354 = scalar_lea.vmem %s4, %s353
      $region44: #{downsample_forward.1} parent=23 // pred_fallthru
        _
      // Predicated region
      $region45: #{downsample_forward.1} parent=23 // pred_check
        %p355 = pneg %p188
      $region46: #{downsample_forward.1} parent=23 // pred_check_branch
        %357 = sbr.rel (%p355) target = $region48
      $region47: #{downsample_forward.1} parent=23 // pred_region
        %p358 = scmp.lt.s32.totalorder %s21, 1
        %s359 = scalar_select %p358, %s21, 1
        %p360 = scmp.lt.s32.totalorder %s22, 0
        %s361 = scalar_select %p360, %s22, 0
        %s362 = sadd.s32 %s361, %s359
        %s363 = smul.addr %s362, 4
        %s364 = scalar_lea.vmem %s5, %s363
      $region48: #{downsample_forward.1} parent=23 // pred_fallthru
        _
    $region24: #{downsample_forward.1} parent=5 // pred_fallthru
      _
    %p365 = scmp.le.s32.totalorder 1, %s14
    %p366 = scmp.lt.s32.totalorder %s14, 3
    %p367 = pnand %p365, %p366
    %p368 = pneg %p367
    // Predicated region
    $region49: #{downsample_forward.1} parent=5 // pred_check
      _
    $region50: #{downsample_forward.1} parent=5 // pred_check_branch
      %370 = sbr.rel (%p367) target = $region52
    $region51: #{downsample_forward.1} parent=5 // pred_region
      %s371 = ssub.s32 %s14, 1
      %s372 = smul.u32 8, %s24
      %p373 = scmp.lt.s32.totalorder %s23, 1
      %s374 = scalar_select %p373, %s23, 1
      %p375 = scmp.lt.s32.totalorder %s372, 7
      %s376 = scalar_select %p375, %s372, 7
      %s377 = smul.addr %s376, 2
      %s378 = smul.addr %s374, 16
      %s379 = sadd.s32 %s377, %s378
      %s380 = smul.addr %s379, 4
      %s381 = scalar_lea.vmem %s0, %s380
      %p382 = pneg %p54
      %p383 = pneg %p51
      %s384 = smul.u32 8, %s24
      %p385 = scmp.lt.s32.totalorder %s23, 1
      %s386 = scalar_select %p385, %s23, 1
      %p387 = scmp.lt.s32.totalorder %s384, 7
      %s388 = scalar_select %p387, %s384, 7
      %s389 = smul.addr %s386, 8
      %s390 = sadd.s32 %s388, %s389
      %s391 = smul.addr %s390, 4
      %s392 = scalar_lea.vmem %s1, %s391
      %p393 = pneg %p82
      %p394 = pneg %p79
      %s395 = smul.u32 8, %s24
      %p396 = scmp.lt.s32.totalorder %s23, 1
      %s397 = scalar_select %p396, %s23, 1
      %p398 = scmp.lt.s32.totalorder %s395, 7
      %s399 = scalar_select %p398, %s395, 7
      %s400 = smul.addr %s399, 2
      %s401 = smul.addr %s397, 16
      %s402 = sadd.s32 %s400, %s401
      %s403 = smul.addr %s402, 4
      %s404 = scalar_lea.vmem %s2, %s403
      %p405 = pneg %p110
      %p406 = pneg %p107
      %s407 = smul.u32 8, %s24
      %p408 = scmp.lt.s32.totalorder %s23, 1
      %s409 = scalar_select %p408, %s23, 1
      %p410 = scmp.lt.s32.totalorder %s407, 7
      %s411 = scalar_select %p410, %s407, 7
      %s412 = smul.addr %s409, 8
      %s413 = sadd.s32 %s411, %s412
      %s414 = smul.addr %s413, 4
      %s415 = scalar_lea.vmem %s3, %s414
      %p416 = pneg %p138
      %p417 = pneg %p135
      %p418 = scmp.lt.s32.totalorder %s23, 1
      %s419 = scalar_select %p418, %s23, 1
      %p420 = scmp.lt.s32.totalorder %s24, 0
      %s421 = scalar_select %p420, %s24, 0
      %s422 = smul.addr %s421, 2
      %s423 = smul.addr %s419, 2
      %s424 = sadd.s32 %s422, %s423
      %s425 = smul.addr %s424, 4
      %s426 = scalar_lea.vmem %s4, %s425
      %p427 = pneg %p166
      %p428 = pneg %p163
      %p429 = scmp.lt.s32.totalorder %s23, 1
      %s430 = scalar_select %p429, %s23, 1
      %p431 = scmp.lt.s32.totalorder %s24, 0
      %s432 = scalar_select %p431, %s24, 0
      %s433 = sadd.s32 %s432, %s430
      %s434 = smul.addr %s433, 4
      %s435 = scalar_lea.vmem %s5, %s434
      %p436 = pneg %p194
      %p437 = pneg %p191
      %p438 = pneg %p215
      %p439 = pneg %p212
      %p440 = pneg %p236
      %p441 = pneg %p233
      %p442 = pneg %p264
      %p443 = pneg %p261
      %s444 = smul.u32 8, %s24
      %p445 = scmp.lt.s32.totalorder %s23, 1
      %s446 = scalar_select %p445, %s23, 1
      %p447 = scmp.lt.s32.totalorder %s444, 7
      %s448 = scalar_select %p447, %s444, 7
      %s449 = smul.addr %s446, 8
      %s450 = sadd.s32 %s448, %s449
      %s451 = smul.addr %s450, 8
      %s452 = scalar_lea.vmem %s8, %s451
      %s453 = smul.u32 8, %s24
      %p454 = scmp.lt.s32.totalorder %s23, 1
      %s455 = scalar_select %p454, %s23, 1
      %p456 = scmp.lt.s32.totalorder %s453, 7
      %s457 = scalar_select %p456, %s453, 7
      %s458 = smul.addr %s457, 2
      %s459 = smul.addr %s455, 16
      %s460 = sadd.s32 %s458, %s459
      %s461 = smul.addr %s460, 4
      %s462 = scalar_lea.vmem %s0, %s461
      %s463 = smul.u32 8, %s24
      %s464 = smul.u32 8, %s24
      %p465 = scmp.lt.s32.totalorder %s23, 1
      %s466 = scalar_select %p465, %s23, 1
      %p467 = scmp.lt.s32.totalorder %s464, 7
      %s468 = scalar_select %p467, %s464, 7
      %s469 = smul.addr %s466, 8
      %s470 = sadd.s32 %s468, %s469
      %s471 = smul.addr %s470, 4
      %s472 = scalar_lea.vmem %s1, %s471
      %s473 = smul.u32 8, %s24
      %s474 = smul.u32 8, %s24
      %p475 = scmp.lt.s32.totalorder %s23, 1
      %s476 = scalar_select %p475, %s23, 1
      %p477 = scmp.lt.s32.totalorder %s474, 7
      %s478 = scalar_select %p477, %s474, 7
      %s479 = smul.addr %s478, 2
      %s480 = smul.addr %s476, 16
      %s481 = sadd.s32 %s479, %s480
      %s482 = smul.addr %s481, 4
      %s483 = scalar_lea.vmem %s2, %s482
      %s484 = smul.u32 8, %s24
      %s485 = smul.u32 8, %s24
      %p486 = scmp.lt.s32.totalorder %s23, 1
      %s487 = scalar_select %p486, %s23, 1
      %p488 = scmp.lt.s32.totalorder %s485, 7
      %s489 = scalar_select %p488, %s485, 7
      %s490 = smul.addr %s487, 8
      %s491 = sadd.s32 %s489, %s490
      %s492 = smul.addr %s491, 4
      %s493 = scalar_lea.vmem %s3, %s492
      %s494 = smul.u32 8, %s24
      %p495 = scmp.lt.s32.totalorder %s23, 1
      %s496 = scalar_select %p495, %s23, 1
      %p497 = scmp.lt.s32.totalorder %s24, 0
      %s498 = scalar_select %p497, %s24, 0
      %s499 = smul.addr %s498, 2
      %s500 = smul.addr %s496, 2
      %s501 = sadd.s32 %s499, %s500
      %s502 = smul.addr %s501, 4
      %s503 = scalar_lea.vmem %s4, %s502
      %p504 = scmp.lt.s32.totalorder %s23, 1
      %s505 = scalar_select %p504, %s23, 1
      %p506 = scmp.lt.s32.totalorder %s24, 0
      %s507 = scalar_select %p506, %s24, 0
      %s508 = sadd.s32 %s507, %s505
      %s509 = smul.addr %s508, 4
      %s510 = scalar_lea.vmem %s5, %s509
      %s511 = smul.u32 8, %s24
      %p512 = scmp.lt.s32.totalorder %s23, 1
      %s513 = scalar_select %p512, %s23, 1
      %p514 = scmp.lt.s32.totalorder %s511, 7
      %s515 = scalar_select %p514, %s511, 7
      %s516 = smul.addr %s513, 8
      %s517 = sadd.s32 %s515, %s516
      %s518 = smul.addr %s517, 8
      %s519 = scalar_lea.vmem %s8, %s518
      %s520 = smul.u32 8, %s24
      %v522 = vld [vmem:[%s462] sm:$0xf]
      %v523 = vld [vmem:[%s462 + $0x8] sm:$0xf]
      %v524 = vld [vmem:[%s462 + $0x10] sm:$0xf]
      %v525 = vld [vmem:[%s462 + $0x18] sm:$0xf]
      %v526 = vld [vmem:[%s462 + $0x20] sm:$0xf]
      %v527 = vld [vmem:[%s462 + $0x28] sm:$0xf]
      %v528 = vld [vmem:[%s462 + $0x30] sm:$0xf]
      %v529 = vld [vmem:[%s462 + $0x38] sm:$0xf]
      %v530 = vld [vmem:[%s472] sm:$0xf]
      %v531 = vld [vmem:[%s472 + $0x4] sm:$0xf]
      %v532 = vld [vmem:[%s472 + $0x8] sm:$0xf]
      %v533 = vld [vmem:[%s472 + $0xc] sm:$0xf]
      %v534 = vld [vmem:[%s472 + $0x10] sm:$0xf]
      %v535 = vld [vmem:[%s472 + $0x14] sm:$0xf]
      %v536 = vld [vmem:[%s472 + $0x18] sm:$0xf]
      %v537 = vld [vmem:[%s472 + $0x1c] sm:$0xf]
      %v538 = vld [vmem:[%s462 + $0x4] sm:$0x1]
      %v539 = vld [vmem:[%s462 + $0xc] sm:$0x1]
      %v540 = vld [vmem:[%s462 + $0x14] sm:$0x1]
      %v541 = vld [vmem:[%s462 + $0x1c] sm:$0x1]
      %v542 = vld [vmem:[%s462 + $0x24] sm:$0x1]
      %v543 = vld [vmem:[%s462 + $0x2c] sm:$0x1]
      %v544 = vld [vmem:[%s462 + $0x34] sm:$0x1]
      %v545 = vld [vmem:[%s462 + $0x3c] sm:$0x1]
      %vm546 = vsmask.f32 3328
      %vm547 = vsmask.f32 7440
      %vm548 = vmor %vm546, %vm547
      %v550 = vshrl.u32 %v522, 16
      %v552 = vrot.slane %v550, 4
      %v553 = vshll.u32 %v522, 16
      %v555 = vrot.slane %v553, 5
      %v556 = vor.u32 %v552, %v555
      %v557 = vrot.slane %v556, 4
      %v559 = vshll.u32 %v538, 16
      %v561 = vrot.slane %v559, 5
      %v562 = vsel %vm548, %v557, %v561
      %v564 = vshrl.u32 %v523, 16
      %v566 = vrot.slane %v564, 4
      %v567 = vshll.u32 %v523, 16
      %v569 = vrot.slane %v567, 5
      %v570 = vor.u32 %v566, %v569
      %v571 = vrot.slane %v570, 4
      %v573 = vshll.u32 %v539, 16
      %v575 = vrot.slane %v573, 5
      %v576 = vsel %vm548, %v571, %v575
      %v578 = vshrl.u32 %v524, 16
      %v580 = vrot.slane %v578, 4
      %v581 = vshll.u32 %v524, 16
      %v583 = vrot.slane %v581, 5
      %v584 = vor.u32 %v580, %v583
      %v585 = vrot.slane %v584, 4
      %v587 = vshll.u32 %v540, 16
      %v589 = vrot.slane %v587, 5
      %v590 = vsel %vm548, %v585, %v589
      %v592 = vshrl.u32 %v525, 16
      %v594 = vrot.slane %v592, 4
      %v595 = vshll.u32 %v525, 16
      %v597 = vrot.slane %v595, 5
      %v598 = vor.u32 %v594, %v597
      %v599 = vrot.slane %v598, 4
      %v601 = vshll.u32 %v541, 16
      %v603 = vrot.slane %v601, 5
      %v604 = vsel %vm548, %v599, %v603
      %v606 = vshrl.u32 %v526, 16
      %v608 = vrot.slane %v606, 4
      %v609 = vshll.u32 %v526, 16
      %v611 = vrot.slane %v609, 5
      %v612 = vor.u32 %v608, %v611
      %v613 = vrot.slane %v612, 4
      %v615 = vshll.u32 %v542, 16
      %v617 = vrot.slane %v615, 5
      %v618 = vsel %vm548, %v613, %v617
      %v620 = vshrl.u32 %v527, 16
      %v622 = vrot.slane %v620, 4
      %v623 = vshll.u32 %v527, 16
      %v625 = vrot.slane %v623, 5
      %v626 = vor.u32 %v622, %v625
      %v627 = vrot.slane %v626, 4
      %v629 = vshll.u32 %v543, 16
      %v631 = vrot.slane %v629, 5
      %v632 = vsel %vm548, %v627, %v631
      %v634 = vshrl.u32 %v528, 16
      %v636 = vrot.slane %v634, 4
      %v637 = vshll.u32 %v528, 16
      %v639 = vrot.slane %v637, 5
      %v640 = vor.u32 %v636, %v639
      %v641 = vrot.slane %v640, 4
      %v643 = vshll.u32 %v544, 16
      %v645 = vrot.slane %v643, 5
      %v646 = vsel %vm548, %v641, %v645
      %v648 = vshrl.u32 %v529, 16
      %v650 = vrot.slane %v648, 4
      %v651 = vshll.u32 %v529, 16
      %v653 = vrot.slane %v651, 5
      %v654 = vor.u32 %v650, %v653
      %v655 = vrot.slane %v654, 4
      %v657 = vshll.u32 %v545, 16
      %v659 = vrot.slane %v657, 5
      %v660 = vsel %vm548, %v655, %v659
      %v661 = vld [vmem:[%s483] sm:$0xf]
      %v662 = vld [vmem:[%s483 + $0x8] sm:$0xf]
      %v663 = vld [vmem:[%s483 + $0x10] sm:$0xf]
      %v664 = vld [vmem:[%s483 + $0x18] sm:$0xf]
      %v665 = vld [vmem:[%s483 + $0x20] sm:$0xf]
      %v666 = vld [vmem:[%s483 + $0x28] sm:$0xf]
      %v667 = vld [vmem:[%s483 + $0x30] sm:$0xf]
      %v668 = vld [vmem:[%s483 + $0x38] sm:$0xf]
      %v669 = vld [vmem:[%s493] sm:$0xf]
      %v670 = vld [vmem:[%s493 + $0x4] sm:$0xf]
      %v671 = vld [vmem:[%s493 + $0x8] sm:$0xf]
      %v672 = vld [vmem:[%s493 + $0xc] sm:$0xf]
      %v673 = vld [vmem:[%s493 + $0x10] sm:$0xf]
      %v674 = vld [vmem:[%s493 + $0x14] sm:$0xf]
      %v675 = vld [vmem:[%s493 + $0x18] sm:$0xf]
      %v676 = vld [vmem:[%s493 + $0x1c] sm:$0xf]
      %v677 = vld [vmem:[%s483 + $0x4] sm:$0x1]
      %v678 = vld [vmem:[%s483 + $0xc] sm:$0x1]
      %v679 = vld [vmem:[%s483 + $0x14] sm:$0x1]
      %v680 = vld [vmem:[%s483 + $0x1c] sm:$0x1]
      %v681 = vld [vmem:[%s483 + $0x24] sm:$0x1]
      %v682 = vld [vmem:[%s483 + $0x2c] sm:$0x1]
      %v683 = vld [vmem:[%s483 + $0x34] sm:$0x1]
      %v684 = vld [vmem:[%s483 + $0x3c] sm:$0x1]
      %v686 = vshrl.u32 %v661, 16
      %v688 = vrot.slane %v686, 4
      %v689 = vshll.u32 %v661, 16
      %v691 = vrot.slane %v689, 5
      %v692 = vor.u32 %v688, %v691
      %v693 = vrot.slane %v692, 4
      %v695 = vshll.u32 %v677, 16
      %v697 = vrot.slane %v695, 5
      %v698 = vsel %vm548, %v693, %v697
      %v700 = vshrl.u32 %v662, 16
      %v702 = vrot.slane %v700, 4
      %v703 = vshll.u32 %v662, 16
      %v705 = vrot.slane %v703, 5
      %v706 = vor.u32 %v702, %v705
      %v707 = vrot.slane %v706, 4
      %v709 = vshll.u32 %v678, 16
      %v711 = vrot.slane %v709, 5
      %v712 = vsel %vm548, %v707, %v711
      %v714 = vshrl.u32 %v663, 16
      %v716 = vrot.slane %v714, 4
      %v717 = vshll.u32 %v663, 16
      %v719 = vrot.slane %v717, 5
      %v720 = vor.u32 %v716, %v719
      %v721 = vrot.slane %v720, 4
      %v723 = vshll.u32 %v679, 16
      %v725 = vrot.slane %v723, 5
      %v726 = vsel %vm548, %v721, %v725
      %v728 = vshrl.u32 %v664, 16
      %v730 = vrot.slane %v728, 4
      %v731 = vshll.u32 %v664, 16
      %v733 = vrot.slane %v731, 5
      %v734 = vor.u32 %v730, %v733
      %v735 = vrot.slane %v734, 4
      %v737 = vshll.u32 %v680, 16
      %v739 = vrot.slane %v737, 5
      %v740 = vsel %vm548, %v735, %v739
      %v742 = vshrl.u32 %v665, 16
      %v744 = vrot.slane %v742, 4
      %v745 = vshll.u32 %v665, 16
      %v747 = vrot.slane %v745, 5
      %v748 = vor.u32 %v744, %v747
      %v749 = vrot.slane %v748, 4
      %v751 = vshll.u32 %v681, 16
      %v753 = vrot.slane %v751, 5
      %v754 = vsel %vm548, %v749, %v753
      %v756 = vshrl.u32 %v666, 16
      %v758 = vrot.slane %v756, 4
      %v759 = vshll.u32 %v666, 16
      %v761 = vrot.slane %v759, 5
      %v762 = vor.u32 %v758, %v761
      %v763 = vrot.slane %v762, 4
      %v765 = vshll.u32 %v682, 16
      %v767 = vrot.slane %v765, 5
      %v768 = vsel %vm548, %v763, %v767
      %v770 = vshrl.u32 %v667, 16
      %v772 = vrot.slane %v770, 4
      %v773 = vshll.u32 %v667, 16
      %v775 = vrot.slane %v773, 5
      %v776 = vor.u32 %v772, %v775
      %v777 = vrot.slane %v776, 4
      %v779 = vshll.u32 %v683, 16
      %v781 = vrot.slane %v779, 5
      %v782 = vsel %vm548, %v777, %v781
      %v784 = vshrl.u32 %v668, 16
      %v786 = vrot.slane %v784, 4
      %v787 = vshll.u32 %v668, 16
      %v789 = vrot.slane %v787, 5
      %v790 = vor.u32 %v786, %v789
      %v791 = vrot.slane %v790, 4
      %v793 = vshll.u32 %v684, 16
      %v795 = vrot.slane %v793, 5
      %v796 = vsel %vm548, %v791, %v795
      %v797 = vld [vmem:[%s503] sm:$0xf]
      %s798 = scalar_lea.vmem %s462, 8
      %v799 = vld [vmem:[%s798] sm:$0xf]
      %v800 = vld [vmem:[%s798 + $0x8] sm:$0xf]
      %v801 = vld [vmem:[%s798 + $0x10] sm:$0xf]
      %v802 = vld [vmem:[%s798 + $0x18] sm:$0xf]
      %v803 = vld [vmem:[%s798 + $0x20] sm:$0xf]
      %v804 = vld [vmem:[%s798 + $0x28] sm:$0xf]
      %v805 = vld [vmem:[%s798 + $0x30] sm:$0xf]
      %v806 = vld [vmem:[%s510] sm:$0xf]
      %s807 = scalar_lea.vmem %s472, 4
      %v808 = vld [vmem:[%s807] sm:$0xf]
      %v809 = vld [vmem:[%s807 + $0x4] sm:$0xf]
      %v810 = vld [vmem:[%s807 + $0x8] sm:$0xf]
      %v811 = vld [vmem:[%s807 + $0xc] sm:$0xf]
      %v812 = vld [vmem:[%s807 + $0x10] sm:$0xf]
      %v813 = vld [vmem:[%s807 + $0x14] sm:$0xf]
      %v814 = vld [vmem:[%s807 + $0x18] sm:$0xf]
      %v815 = vld [vmem:[%s503 + $0x4] sm:$0x1]
      %v816 = vld [vmem:[%s798 + $0x4] sm:$0x1]
      %v817 = vld [vmem:[%s798 + $0xc] sm:$0x1]
      %v818 = vld [vmem:[%s798 + $0x14] sm:$0x1]
      %v819 = vld [vmem:[%s798 + $0x1c] sm:$0x1]
      %v820 = vld [vmem:[%s798 + $0x24] sm:$0x1]
      %v821 = vld [vmem:[%s798 + $0x2c] sm:$0x1]
      %v822 = vld [vmem:[%s798 + $0x34] sm:$0x1]
      %v824 = vshrl.u32 %v799, 16
      %v826 = vrot.slane %v824, 4
      %v827 = vshll.u32 %v799, 16
      %v829 = vrot.slane %v827, 5
      %v830 = vor.u32 %v826, %v829
      %v831 = vrot.slane %v830, 4
      %v833 = vshll.u32 %v816, 16
      %v835 = vrot.slane %v833, 5
      %v836 = vsel %vm548, %v831, %v835
      %v838 = vshrl.u32 %v800, 16
      %v840 = vrot.slane %v838, 4
      %v841 = vshll.u32 %v800, 16
      %v843 = vrot.slane %v841, 5
      %v844 = vor.u32 %v840, %v843
      %v845 = vrot.slane %v844, 4
      %v847 = vshll.u32 %v817, 16
      %v849 = vrot.slane %v847, 5
      %v850 = vsel %vm548, %v845, %v849
      %v852 = vshrl.u32 %v801, 16
      %v854 = vrot.slane %v852, 4
      %v855 = vshll.u32 %v801, 16
      %v857 = vrot.slane %v855, 5
      %v858 = vor.u32 %v854, %v857
      %v859 = vrot.slane %v858, 4
      %v861 = vshll.u32 %v818, 16
      %v863 = vrot.slane %v861, 5
      %v864 = vsel %vm548, %v859, %v863
      %v866 = vshrl.u32 %v802, 16
      %v868 = vrot.slane %v866, 4
      %v869 = vshll.u32 %v802, 16
      %v871 = vrot.slane %v869, 5
      %v872 = vor.u32 %v868, %v871
      %v873 = vrot.slane %v872, 4
      %v875 = vshll.u32 %v819, 16
      %v877 = vrot.slane %v875, 5
      %v878 = vsel %vm548, %v873, %v877
      %v880 = vshrl.u32 %v803, 16
      %v882 = vrot.slane %v880, 4
      %v883 = vshll.u32 %v803, 16
      %v885 = vrot.slane %v883, 5
      %v886 = vor.u32 %v882, %v885
      %v887 = vrot.slane %v886, 4
      %v889 = vshll.u32 %v820, 16
      %v891 = vrot.slane %v889, 5
      %v892 = vsel %vm548, %v887, %v891
      %v894 = vshrl.u32 %v804, 16
      %v896 = vrot.slane %v894, 4
      %v897 = vshll.u32 %v804, 16
      %v899 = vrot.slane %v897, 5
      %v900 = vor.u32 %v896, %v899
      %v901 = vrot.slane %v900, 4
      %v903 = vshll.u32 %v821, 16
      %v905 = vrot.slane %v903, 5
      %v906 = vsel %vm548, %v901, %v905
      %v908 = vshrl.u32 %v805, 16
      %v910 = vrot.slane %v908, 4
      %v911 = vshll.u32 %v805, 16
      %v913 = vrot.slane %v911, 5
      %v914 = vor.u32 %v910, %v913
      %v915 = vrot.slane %v914, 4
      %v917 = vshll.u32 %v822, 16
      %v919 = vrot.slane %v917, 5
      %v920 = vsel %vm548, %v915, %v919
      %v922 = vshrl.u32 %v797, 16
      %v924 = vrot.slane %v922, 4
      %v925 = vshll.u32 %v797, 16
      %v927 = vrot.slane %v925, 5
      %v928 = vor.u32 %v924, %v927
      %v929 = vrot.slane %v928, 4
      %v931 = vshll.u32 %v815, 16
      %v933 = vrot.slane %v931, 5
      %v934 = vsel %vm548, %v929, %v933
      %v943 = vunpack.c.l.b16 %v522
      %v944 = vunpack.c.l.b16 %v523
      %v945 = vunpack.c.l.b16 %v524
      %v946 = vunpack.c.l.b16 %v525
      %v947 = vunpack.c.l.b16 %v526
      %v948 = vunpack.c.l.b16 %v527
      %v949 = vunpack.c.l.b16 %v528
      %v950 = vunpack.c.l.b16 %v529
      %v951 = vpack.c.b16 %v944, %v943
      %v952 = vpack.c.b16 %v946, %v945
      %v953 = vpack.c.b16 %v948, %v947
      %v954 = vpack.c.b16 %v950, %v949
      %v963 = vunpack.c.l.b16 %v530
      %v964 = vunpack.c.l.b16 %v531
      %v965 = vunpack.c.l.b16 %v532
      %v966 = vunpack.c.l.b16 %v533
      %v967 = vunpack.c.l.b16 %v534
      %v968 = vunpack.c.l.b16 %v535
      %v969 = vunpack.c.l.b16 %v536
      %v970 = vunpack.c.l.b16 %v537
      %v971 = vpack.c.b16 %v964, %v963
      %v972 = vpack.c.b16 %v966, %v965
      %v973 = vpack.c.b16 %v968, %v967
      %v974 = vpack.c.b16 %v970, %v969
      %975 = vrot.lane.b32.xlu0 %v971, 4
      %v976 = vpop.permute.xlu0 %975
      %977 = vrot.lane.b32.xlu0 %v972, 4
      %v978 = vpop.permute.xlu0 %977
      %979 = vrot.lane.b32.xlu0 %v973, 4
      %v980 = vpop.permute.xlu0 %979
      %981 = vrot.lane.b32.xlu0 %v974, 4
      %v982 = vpop.permute.xlu0 %981
      %v983 = vunpack.c.l.b16 %v562
      %v984 = vunpack.c.l.b16 %v576
      %v985 = vunpack.c.l.b16 %v590
      %v986 = vunpack.c.l.b16 %v604
      %v987 = vunpack.c.l.b16 %v618
      %v988 = vunpack.c.l.b16 %v632
      %v989 = vunpack.c.l.b16 %v646
      %v990 = vunpack.c.l.b16 %v660
      %v991 = vpack.c.b16 %v984, %v983
      %v992 = vpack.c.b16 %v986, %v985
      %v993 = vpack.c.b16 %v988, %v987
      %v994 = vpack.c.b16 %v990, %v989
      %995 = vrot.lane.b32.xlu0 %v991, 8
      %v996 = vpop.permute.xlu0 %995
      %997 = vrot.lane.b32.xlu0 %v992, 8
      %v998 = vpop.permute.xlu0 %997
      %999 = vrot.lane.b32.xlu0 %v993, 8
      %v1000 = vpop.permute.xlu0 %999
      %1001 = vrot.lane.b32.xlu0 %v994, 8
      %v1002 = vpop.permute.xlu0 %1001
      %v1011 = vunpack.c.l.b16 %v661
      %v1012 = vunpack.c.l.b16 %v662
      %v1013 = vunpack.c.l.b16 %v663
      %v1014 = vunpack.c.l.b16 %v664
      %v1015 = vunpack.c.l.b16 %v665
      %v1016 = vunpack.c.l.b16 %v666
      %v1017 = vunpack.c.l.b16 %v667
      %v1018 = vunpack.c.l.b16 %v668
      %v1019 = vpack.c.b16 %v1012, %v1011
      %v1020 = vpack.c.b16 %v1014, %v1013
      %v1021 = vpack.c.b16 %v1016, %v1015
      %v1022 = vpack.c.b16 %v1018, %v1017
      %1023 = vrot.lane.b32.xlu0 %v1019, 12
      %v1024 = vpop.permute.xlu0 %1023
      %1025 = vrot.lane.b32.xlu0 %v1020, 12
      %v1026 = vpop.permute.xlu0 %1025
      %1027 = vrot.lane.b32.xlu0 %v1021, 12
      %v1028 = vpop.permute.xlu0 %1027
      %1029 = vrot.lane.b32.xlu0 %v1022, 12
      %v1030 = vpop.permute.xlu0 %1029
      %v1039 = vunpack.c.l.b16 %v669
      %v1040 = vunpack.c.l.b16 %v670
      %v1041 = vunpack.c.l.b16 %v671
      %v1042 = vunpack.c.l.b16 %v672
      %v1043 = vunpack.c.l.b16 %v673
      %v1044 = vunpack.c.l.b16 %v674
      %v1045 = vunpack.c.l.b16 %v675
      %v1046 = vunpack.c.l.b16 %v676
      %v1047 = vpack.c.b16 %v1040, %v1039
      %v1048 = vpack.c.b16 %v1042, %v1041
      %v1049 = vpack.c.b16 %v1044, %v1043
      %v1050 = vpack.c.b16 %v1046, %v1045
      %1051 = vrot.lane.b32.xlu0 %v1047, 16
      %v1052 = vpop.permute.xlu0 %1051
      %1053 = vrot.lane.b32.xlu0 %v1048, 16
      %v1054 = vpop.permute.xlu0 %1053
      %1055 = vrot.lane.b32.xlu0 %v1049, 16
      %v1056 = vpop.permute.xlu0 %1055
      %1057 = vrot.lane.b32.xlu0 %v1050, 16
      %v1058 = vpop.permute.xlu0 %1057
      %v1059 = vunpack.c.l.b16 %v698
      %v1060 = vunpack.c.l.b16 %v712
      %v1061 = vunpack.c.l.b16 %v726
      %v1062 = vunpack.c.l.b16 %v740
      %v1063 = vunpack.c.l.b16 %v754
      %v1064 = vunpack.c.l.b16 %v768
      %v1065 = vunpack.c.l.b16 %v782
      %v1066 = vunpack.c.l.b16 %v796
      %v1067 = vpack.c.b16 %v1060, %v1059
      %v1068 = vpack.c.b16 %v1062, %v1061
      %v1069 = vpack.c.b16 %v1064, %v1063
      %v1070 = vpack.c.b16 %v1066, %v1065
      %1071 = vrot.lane.b32.xlu0 %v1067, 20
      %v1072 = vpop.permute.xlu0 %1071
      %1073 = vrot.lane.b32.xlu0 %v1068, 20
      %v1074 = vpop.permute.xlu0 %1073
      %1075 = vrot.lane.b32.xlu0 %v1069, 20
      %v1076 = vpop.permute.xlu0 %1075
      %1077 = vrot.lane.b32.xlu0 %v1070, 20
      %v1078 = vpop.permute.xlu0 %1077
      %v1087 = vunpack.c.l.b16 %v799
      %v1088 = vunpack.c.l.b16 %v800
      %v1089 = vunpack.c.l.b16 %v801
      %v1090 = vunpack.c.l.b16 %v802
      %v1091 = vunpack.c.l.b16 %v803
      %v1092 = vunpack.c.l.b16 %v804
      %v1093 = vunpack.c.l.b16 %v805
      %v1094 = vunpack.c.l.b16 %v797
      %v1095 = vpack.c.b16 %v1088, %v1087
      %v1096 = vpack.c.b16 %v1090, %v1089
      %v1097 = vpack.c.b16 %v1092, %v1091
      %v1098 = vpack.c.b16 %v1094, %v1093
      %1099 = vrot.lane.b32.xlu0 %v1095, 24
      %v1100 = vpop.permute.xlu0 %1099
      %1101 = vrot.lane.b32.xlu0 %v1096, 24
      %v1102 = vpop.permute.xlu0 %1101
      %1103 = vrot.lane.b32.xlu0 %v1097, 24
      %v1104 = vpop.permute.xlu0 %1103
      %1105 = vrot.lane.b32.xlu0 %v1098, 24
      %v1106 = vpop.permute.xlu0 %1105
      %v1115 = vunpack.c.l.b16 %v808
      %v1116 = vunpack.c.l.b16 %v809
      %v1117 = vunpack.c.l.b16 %v810
      %v1118 = vunpack.c.l.b16 %v811
      %v1119 = vunpack.c.l.b16 %v812
      %v1120 = vunpack.c.l.b16 %v813
      %v1121 = vunpack.c.l.b16 %v814
      %v1122 = vunpack.c.l.b16 %v806
      %v1123 = vpack.c.b16 %v1116, %v1115
      %v1124 = vpack.c.b16 %v1118, %v1117
      %v1125 = vpack.c.b16 %v1120, %v1119
      %v1126 = vpack.c.b16 %v1122, %v1121
      %1127 = vrot.lane.b32.xlu0 %v1123, 28
      %v1128 = vpop.permute.xlu0 %1127
      %1129 = vrot.lane.b32.xlu0 %v1124, 28
      %v1130 = vpop.permute.xlu0 %1129
      %1131 = vrot.lane.b32.xlu0 %v1125, 28
      %v1132 = vpop.permute.xlu0 %1131
      %1133 = vrot.lane.b32.xlu0 %v1126, 28
      %v1134 = vpop.permute.xlu0 %1133
      %v1135 = vunpack.c.l.b16 %v836
      %v1136 = vunpack.c.l.b16 %v850
      %v1137 = vunpack.c.l.b16 %v864
      %v1138 = vunpack.c.l.b16 %v878
      %v1139 = vunpack.c.l.b16 %v892
      %v1140 = vunpack.c.l.b16 %v906
      %v1141 = vunpack.c.l.b16 %v920
      %v1142 = vunpack.c.l.b16 %v934
      %v1143 = vpack.c.b16 %v1136, %v1135
      %v1144 = vpack.c.b16 %v1138, %v1137
      %v1145 = vpack.c.b16 %v1140, %v1139
      %v1146 = vpack.c.b16 %v1142, %v1141
      %1147 = vrot.lane.b32.xlu0 %v1143, 32
      %v1148 = vpop.permute.xlu0 %1147
      %1149 = vrot.lane.b32.xlu0 %v1144, 32
      %v1150 = vpop.permute.xlu0 %1149
      %1151 = vrot.lane.b32.xlu0 %v1145, 32
      %v1152 = vpop.permute.xlu0 %1151
      %1153 = vrot.lane.b32.xlu0 %v1146, 32
      %v1154 = vpop.permute.xlu0 %1153
      %vm1155 = vcmask 31744
      %v1158 = vsel %vm1155, %v951, %v976
      %v1161 = vsel %vm1155, %v952, %v978
      %v1164 = vsel %vm1155, %v953, %v980
      %v1167 = vsel %vm1155, %v954, %v982
      %vm1168 = vcmask 64512
      %v1170 = vsel %vm1168, %v1158, %v996
      %v1172 = vsel %vm1168, %v1161, %v998
      %v1174 = vsel %vm1168, %v1164, %v1000
      %v1176 = vsel %vm1168, %v1167, %v1002
      %vm1177 = vcmask 97280
      %v1179 = vsel %vm1177, %v1170, %v1024
      %v1181 = vsel %vm1177, %v1172, %v1026
      %v1183 = vsel %vm1177, %v1174, %v1028
      %v1185 = vsel %vm1177, %v1176, %v1030
      %vm1186 = vcmask 130048
      %v1188 = vsel %vm1186, %v1179, %v1052
      %v1190 = vsel %vm1186, %v1181, %v1054
      %v1192 = vsel %vm1186, %v1183, %v1056
      %v1194 = vsel %vm1186, %v1185, %v1058
      %vm1195 = vcmask 162816
      %v1197 = vsel %vm1195, %v1188, %v1072
      %v1199 = vsel %vm1195, %v1190, %v1074
      %v1201 = vsel %vm1195, %v1192, %v1076
      %v1203 = vsel %vm1195, %v1194, %v1078
      %vm1204 = vcmask 195584
      %v1206 = vsel %vm1204, %v1197, %v1100
      %v1208 = vsel %vm1204, %v1199, %v1102
      %v1210 = vsel %vm1204, %v1201, %v1104
      %v1212 = vsel %vm1204, %v1203, %v1106
      %vm1213 = vcmask 228352
      %v1215 = vsel %vm1213, %v1206, %v1128
      %v1217 = vsel %vm1213, %v1208, %v1130
      %v1219 = vsel %vm1213, %v1210, %v1132
      %v1221 = vsel %vm1213, %v1212, %v1134
      %vm1222 = vcmask 261120
      %v1224 = vsel %vm1222, %v1215, %v1148
      %v1226 = vsel %vm1222, %v1217, %v1150
      %v1228 = vsel %vm1222, %v1219, %v1152
      %v1230 = vsel %vm1222, %v1221, %v1154
      %v1231 = vld [vmem:[%s6] sm:$0xf]
      %v1232 = vld [vmem:[%s6 + $0x4] sm:$0xf]
      %v1233 = vld [vmem:[%s6 + $0x8] sm:$0xf]
      %v1234 = vld [vmem:[%s6 + $0xc] sm:$0xf]
      %v1235 = vld [vmem:[%s6 + $0x10] sm:$0x3]
      %v1236 = vld [vmem:[%s7] sm:$0x1]
      %v1238 = vperm.slane %v1236, 0
      %v1245 = vunpack.c.l.b16 %v1231
      %v1246 = vunpack.c.l.b16 %v1232
      %v1247 = vunpack.c.l.b16 %v1233
      %v1248 = vunpack.c.l.b16 %v1234
      %v1249 = vunpack.c.l.b16 %v1235
      %v1250 = vpack.c.b16 %v1246, %v1245
      %v1251 = vpack.c.b16 %v1248, %v1247
      %v1252 = vpack.c.b16 %v1249, %v1249
      %vm1255 = vcmask 293888
      %v1256 = vsel %vm1255, %v1224, 0
      %v1258 = vsel %vm1255, %v1226, 0
      %v1260 = vsel %vm1255, %v1228, 0
      %v1262 = vsel %vm1255, %v1230, 0
      %vm1264 = vcmask 1041408
      %v1266 = vsel %vm1264, %v1252, 0
      %1268 = vmatpush.bf16.msra.mxu0 0
      %1269 = vmatpush.bf16.msra.mxu0 0
      %1270 = vmatpush.bf16.msra.mxu0 0
      %1271 = vmatpush.bf16.msra.mxu0 0
      %1272 = vmatpush.bf16.msra.mxu0 0
      %1273 = vmatpush.bf16.msra.mxu0 %v1266
      %1274 = vmatpush.bf16.msra.mxu0 %v1251
      %1275 = vmatpush.bf16.msra.mxu0 %v1250
      %1276 = vmatmul.bf16.gmra.mxu0 %v1256
      %v1277 = vpop.f32.mrf.mxu0
      %v1278 = vadd.f32 %v1238, %v1277
      %v1279 = vpop.f32.mrf.mxu0
      %v1280 = vadd.f32 %v1238, %v1279
      %1281 = vmatmul.bf16.gmra.mxu0 %v1258
      %v1282 = vpop.f32.mrf.mxu0
      %v1283 = vadd.f32 %v1238, %v1282
      %v1284 = vpop.f32.mrf.mxu0
      %v1285 = vadd.f32 %v1238, %v1284
      %1286 = vmatmul.bf16.gmra.mxu0 %v1260
      %v1287 = vpop.f32.mrf.mxu0
      %v1288 = vadd.f32 %v1238, %v1287
      %v1289 = vpop.f32.mrf.mxu0
      %v1290 = vadd.f32 %v1238, %v1289
      %1291 = vmatmul.bf16.gmra.mxu0 %v1262
      %v1292 = vpop.f32.mrf.mxu0
      %v1293 = vadd.f32 %v1238, %v1292
      %v1294 = vpop.f32.mrf.mxu0
      %v1295 = vadd.f32 %v1238, %v1294
      %1296 = vdwg.mxu0
      %1297 = vst [vmem:[%s519] sm:$0xff] %v1278
      %1298 = vst [vmem:[%s519 + $0x8] sm:$0xff] %v1280
      %1299 = vst [vmem:[%s519 + $0x10] sm:$0xff] %v1283
      %1300 = vst [vmem:[%s519 + $0x18] sm:$0xff] %v1285
      %1301 = vst [vmem:[%s519 + $0x20] sm:$0xff] %v1288
      %1302 = vst [vmem:[%s519 + $0x28] sm:$0xff] %v1290
      %1303 = vst [vmem:[%s519 + $0x30] sm:$0xff] %v1293
      %1304 = vst [vmem:[%s519 + $0x38] sm:$0xff] %v1295
      %s1305 = smul.u32 8, %s24
      %p1306 = scmp.lt.s32.totalorder %s23, 1
      %s1307 = scalar_select %p1306, %s23, 1
      %p1308 = scmp.lt.s32.totalorder %s1305, 7
      %s1309 = scalar_select %p1308, %s1305, 7
      %s1310 = smul.addr %s1307, 8
      %s1311 = sadd.s32 %s1309, %s1310
      %s1312 = smul.addr %s1311, 8
      %s1313 = scalar_lea.vmem %s8, %s1312
      // Predicated region
      $region53: #{downsample_forward.1} parent=51 // pred_check
        %p1314 = pneg %p261
      $region54: #{downsample_forward.1} parent=51 // pred_check_branch
        %1316 = sbr.rel (%p1314) target = $region56
      $region55: #{downsample_forward.1} parent=51 // pred_region
        %s1317 = smul.u32 8, %s24
      $region56: #{downsample_forward.1} parent=51 // pred_fallthru
        _
    $region52: #{downsample_forward.1} parent=5 // pred_fallthru
      _
    %p1318 = scmp.le.s32.totalorder 2, %s14
    // Predicated region
    $region57: #{downsample_forward.1} parent=5 // pred_check
      %p1319 = pneg %p1318
    $region58: #{downsample_forward.1} parent=5 // pred_check_branch
      %1321 = sbr.rel (%p1319) target = $region60
    $region59: #{downsample_forward.1} parent=5 // pred_region
      %s1322 = ssub.s32 %s14, 2
      // Predicated region
      $region61: #{downsample_forward.1} parent=59 // pred_check
        %p1323 = pneg %p267
      $region62: #{downsample_forward.1} parent=59 // pred_check_branch
        %1325 = sbr.rel (%p1323) target = $region64
      $region63: #{downsample_forward.1} parent=59 // pred_region
        %s1326 = smul.u32 8, %s26
        %p1327 = scmp.lt.s32.totalorder %s25, 1
        %s1328 = scalar_select %p1327, %s25, 1
        %p1329 = scmp.lt.s32.totalorder %s1326, 7
        %s1330 = scalar_select %p1329, %s1326, 7
        %s1331 = smul.addr %s1328, 8
        %s1332 = sadd.s32 %s1330, %s1331
        %s1333 = smul.addr %s1332, 8
        %s1334 = scalar_lea.vmem %s8, %s1333
      $region64: #{downsample_forward.1} parent=59 // pred_fallthru
        _
    $region60: #{downsample_forward.1} parent=5 // pred_fallthru
      _
  $region6: #{downsample_forward.1} parent=0 // loop_footer
    %s18 = sadd.s32 1, %s14
  $region7: #{downsample_forward.1} parent=0 // loop_footer_branch
    %13 = sbr.rel target = $region3
  $region8: #{downsample_forward.1} parent=0 // loop_exit
    _

</llo_original>
